<compile_context>
chip_gen: v7x
topology: tpu7x:2x2x1
jax: 0.10.0
libtpu: 0.0.40
codegen_flags: <defaults>
</compile_context>

<pallas_src>
import functools

import jax
import jax.numpy as jnp
from jax import lax
from jax.experimental import pallas as pl
from jax.experimental.pallas import tpu as pltpu

# Explicit scoped-VMEM budget: safe on v5e/v6e (128 MiB physical) and v7x (64 MiB).
_VMEM_LIMIT = 32 * 1024 * 1024


def _pick_tile(dim, candidates):
    """Largest candidate tile that evenly divides `dim`, else the full dim."""
    for c in candidates:
        if c <= dim and dim % c == 0:
            return c
    return dim


def _pick_tq(T, S):
    """Largest q-tile dividing T whose (tq, S)-sized f32 working set (wacc
    scratch + double-buffered weights block + softmax temporaries) stays inside
    a conservative VMEM budget (v7x has only 64 MiB physical per TC)."""
    budget = 24 * 1024 * 1024
    for tq in (512, 256, 128, 64, 32, 16, 8):
        if tq <= T and T % tq == 0 and 8 * 4 * tq * S <= budget:
            return tq
    # TODO(synk): tile S with an online-softmax (flash) loop for very long keys.
    return T


# ---------------------------------------------------------------------------
# Kernel 1: tiled dense projection  out = x @ w_t + b   (w_t pre-transposed)
# ---------------------------------------------------------------------------
def _linear_kernel(x_ref, w_ref, b_ref, o_ref, acc_ref, *, mxu_dtype):
    k = pl.program_id(2)

    @pl.when(k == 0)
    def _init():
        acc_ref[...] = jnp.zeros_like(acc_ref)

    x = x_ref[...]
    w = w_ref[...]
    if mxu_dtype is not None:          # bf16 MXU operands, f32 accumulation
        x = x.astype(mxu_dtype)
        w = w.astype(mxu_dtype)
    acc_ref[...] += jnp.dot(x, w, preferred_element_type=jnp.float32)

    @pl.when(k == pl.num_programs(2) - 1)
    def _finalize():
        o_ref[...] = (acc_ref[...] + b_ref[...].astype(jnp.float32)).astype(o_ref.dtype)


def pallas_linear(x, w_t, b, *, mxu_dtype=None):
    """x: (M, K), w_t: (K, N) (weight already transposed once in the wrapper),
    b: (N,) -> (M, N)."""
    M, K = x.shape
    N = w_t.shape[1]
    tm = _pick_tile(M, (512, 256, 128, 64, 32, 16, 8))
    tn = _pick_tile(N, (256, 128))
    tk = _pick_tile(K, (1024, 512, 256, 128))
    kernel = functools.partial(_linear_kernel, mxu_dtype=mxu_dtype)
    return pl.pallas_call(
        kernel,
        out_shape=jax.ShapeDtypeStruct((M, N), x.dtype),
        grid=(M // tm, N // tn, K // tk),
        in_specs=[
            pl.BlockSpec((tm, tk), lambda i, j, k: (i, k)),
            pl.BlockSpec((tk, tn), lambda i, j, k: (k, j)),
            pl.BlockSpec((1, tn), lambda i, j, k: (0, j)),
        ],
        out_specs=pl.BlockSpec((tm, tn), lambda i, j, k: (i, j)),
        scratch_shapes=[pltpu.VMEM((tm, tn), jnp.float32)],
        compiler_params=pltpu.CompilerParams(
            dimension_semantics=("parallel", "parallel", "arbitrary"),
            vmem_limit_bytes=_VMEM_LIMIT),
    )(x, w_t, b.reshape(1, N))


# ---------------------------------------------------------------------------
# Kernel 2: attention per (batch, q-tile, head-group) with packed heads and
#           in-kernel head averaging of the attention weights.
# ---------------------------------------------------------------------------
def _attention_kernel(q_ref, k_ref, v_ref, o_ref, w_ref, wacc_ref, *,
                      scaling, num_heads, heads_per_block, mxu_dtype):
    g = pl.program_id(2)
    hd = q_ref.shape[-1] // heads_per_block

    @pl.when(g == 0)
    def _init():
        wacc_ref[...] = jnp.zeros_like(wacc_ref)

    q = q_ref[...].astype(jnp.float32) * scaling                # (tq, G*hd)
    k = k_ref[...]                                              # (S,  G*hd)
    v = v_ref[...]                                              # (S,  G*hd)
    if mxu_dtype is not None:
        q = q.astype(mxu_dtype)
        k = k.astype(mxu_dtype)
        v = v.astype(mxu_dtype)

    outs = []
    p_sum = None
    for j in range(heads_per_block):        # static unroll over packed heads
        sl = slice(j * hd, (j + 1) * hd)
        s = lax.dot_general(q[:, sl], k[:, sl],
                            dimension_numbers=(((1,), (1,)), ((), ())),
                            preferred_element_type=jnp.float32)  # (tq, S)
        s = s - jnp.max(s, axis=-1, keepdims=True)
        e = jnp.exp(s)
        # Approx reciprocal (EUP) only on the reduced-precision path; exact otherwise.
        p = e * pl.reciprocal(jnp.sum(e, axis=-1, keepdims=True),
                              approx=mxu_dtype is not None)
        p_sum = p if p_sum is None else p_sum + p
        outs.append(jnp.dot(p.astype(v.dtype), v[:, sl],
                            preferred_element_type=jnp.float32))  # (tq, hd)

    # Single lane-dense (G*hd wide) store of the packed per-head outputs.
    o_ref[...] = jnp.concatenate(outs, axis=-1).astype(o_ref.dtype)

    # Head-averaged weights accumulated in VMEM across the 'arbitrary' group
    # axis (the per-head (B*H, T, S) tensor never touches HBM).
    wacc_ref[...] += p_sum

    @pl.when(g == pl.num_programs(2) - 1)
    def _finalize():
        w_ref[0] = (wacc_ref[...] * (1.0 / num_heads)).astype(w_ref.dtype)


def pallas_attention(q_arr, k_arr, v_arr, *, T, S, B, D, num_heads, blk,
                     q_stride, k_stride, v_stride, q_base, k_base, v_base,
                     scaling, mxu_dtype=None):
    """Inputs are token-major 2-D activation buffers whose columns are per-batch
    panels; (batch, q|k|v, head-group) selection is done purely in the index
    maps.  Returns attn (T, B*D) and head-averaged weights (B, T, S)."""
    hd = D // num_heads
    G = blk // hd
    n_groups = num_heads // G
    tq = _pick_tq(T, S)
    o_stride = D // blk

    kernel = functools.partial(
        _attention_kernel, scaling=scaling, num_heads=num_heads,
        heads_per_block=G, mxu_dtype=mxu_dtype)

    return pl.pallas_call(
        kernel,
        out_shape=(jax.ShapeDtypeStruct((T, B * D), q_arr.dtype),
                   jax.ShapeDtypeStruct((B, T, S), q_arr.dtype)),
        grid=(B, T // tq, n_groups),
        in_specs=[
            pl.BlockSpec((tq, blk), lambda b, qi, g: (qi, b * q_stride + q_base + g)),
            pl.BlockSpec((S, blk), lambda b, qi, g: (0, b * k_stride + k_base + g)),
            pl.BlockSpec((S, blk), lambda b, qi, g: (0, b * v_stride + v_base + g)),
        ],
        out_specs=(
            pl.BlockSpec((tq, blk), lambda b, qi, g: (qi, b * o_stride + g)),
            pl.BlockSpec((1, tq, S), lambda b, qi, g: (b, qi, 0)),
        ),
        scratch_shapes=[pltpu.VMEM((tq, S), jnp.float32)],
        compiler_params=pltpu.CompilerParams(
            dimension_semantics=("parallel", "parallel", "arbitrary"),
            vmem_limit_bytes=_VMEM_LIMIT),
    )(q_arr, k_arr, v_arr)


# ---------------------------------------------------------------------------
# Module wrapper
# ---------------------------------------------------------------------------
def _head_group(num_heads, head_dim):
    """Largest G dividing num_heads with G*head_dim <= 128 (lane-dense blocks)."""
    G = 1
    for g in range(1, num_heads + 1):
        if num_heads % g == 0 and g * head_dim <= 128:
            G = g
    return G


def multihead_attention_forward(query, key, value, params, num_heads, *,
                                mxu_dtype=None):
    """Mirrors MultiheadAttention.forward for attn_mask=None, dropout=0,
    add_bias_kv=False, add_zero_attn=False.
    mxu_dtype=jnp.bfloat16 feeds the MXU bf16 operands (f32 accumulation)."""
    # TODO(synk): attn_mask / dropout / bias_kv / add_zero_attn branches not implemented.
    T, B, D = query.shape
    H = num_heads
    hd = D // H
    scaling = float(hd) ** -0.5
    G = _head_group(H, hd)
    blk = G * hd
    # TODO(synk): if blk is not a multiple of 128 (unfriendly head_dim), pad
    # head_dim instead of relying on sub-128-lane blocks.

    # One-time weight transposes (amortized over all row tiles; keeps the GEMM
    # kernel a plain (tm,tk)@(tk,tn) contraction).  In a real model these would
    # be pre-transposed once at parameter-init time.
    w_in_t = params["in_proj_weight"].T      # (D, 3D)
    b_in = params["in_proj_bias"]            # (3D,)
    w_out_t = params["out_proj_weight"].T    # (D, D)
    b_out = params["out_proj_bias"]          # (D,)

    if (query is key) and (query is value):
        # Self-attention: one fused QKV GEMM; its (T*B, 3D) output is viewed as
        # (T, B*3D) and consumed in place by the attention kernel.
        qkv = pallas_linear(query.reshape(T * B, D), w_in_t, b_in, mxu_dtype=mxu_dtype)
        qkv2d = qkv.reshape(T, B * 3 * D)
        S = T
        attn2d, avg_w = pallas_attention(
            qkv2d, qkv2d, qkv2d, T=T, S=S, B=B, D=D, num_heads=H, blk=blk,
            q_stride=3 * D // blk, k_stride=3 * D // blk, v_stride=3 * D // blk,
            q_base=0, k_base=D // blk, v_base=2 * D // blk,
            scaling=scaling, mxu_dtype=mxu_dtype)
    else:
        # Generic path (covers torch's kv_same and fully-separate cases):
        # projections with the corresponding in_proj_weight slices, outputs
        # already in the (T, B*D) / (S, B*D) layout the attention kernel wants.
        S = key.shape[0]
        q2 = pallas_linear(query.reshape(T * B, D), w_in_t[:, :D], b_in[:D],
                           mxu_dtype=mxu_dtype).reshape(T, B * D)
        k2 = pallas_linear(key.reshape(S * B, D), w_in_t[:, D:2 * D], b_in[D:2 * D],
                           mxu_dtype=mxu_dtype).reshape(S, B * D)
        v2 = pallas_linear(value.reshape(S * B, D), w_in_t[:, 2 * D:], b_in[2 * D:],
                           mxu_dtype=mxu_dtype).reshape(S, B * D)
        attn2d, avg_w = pallas_attention(
            q2, k2, v2, T=T, S=S, B=B, D=D, num_heads=H, blk=blk,
            q_stride=D // blk, k_stride=D // blk, v_stride=D // blk,
            q_base=0, k_base=0, v_base=0,
            scaling=scaling, mxu_dtype=mxu_dtype)

    # attn2d is (T, B*D): free reshapes give (T*B, D) rows for the output
    # projection and the final (T, B, D) layout — no activation transpose.
    out = pallas_linear(attn2d.reshape(T * B, D), w_out_t, b_out, mxu_dtype=mxu_dtype)
    return out.reshape(T, B, D), avg_w


# ---------------------------------------------------------------------------
# Deterministic parameter init (mirrors nn.init.xavier_uniform_ / zeros)
# ---------------------------------------------------------------------------
def init_params(key, embed_dim):
    k1, k2 = jax.random.split(key)

    def xavier_uniform(k, shape):
        fan_out, fan_in = shape
        bound = (6.0 / (fan_in + fan_out)) ** 0.5
        return jax.random.uniform(k, shape, jnp.float32, -bound, bound)

    return {
        "in_proj_weight": xavier_uniform(k1, (3 * embed_dim, embed_dim)),
        "in_proj_bias": jnp.zeros((3 * embed_dim,), jnp.float32),
        "out_proj_weight": xavier_uniform(k2, (embed_dim, embed_dim)),
        "out_proj_bias": jnp.zeros((embed_dim,), jnp.float32),
    }


# Pure-JAX reference for correctness checks (query/key/value general case).
def reference_forward(query, key, value, params, num_heads):
    T, B, D = query.shape
    S = key.shape[0]
    hd = D // num_heads
    scaling = float(hd) ** -0.5
    w, bias = params["in_proj_weight"], params["in_proj_bias"]
    hp = "highest"
    q = jnp.dot(query.reshape(T * B, D), w[:D].T, precision=hp) + bias[:D]
    k = jnp.dot(key.reshape(S * B, D), w[D:2 * D].T, precision=hp) + bias[D:2 * D]
    v = jnp.dot(value.reshape(S * B, D), w[2 * D:].T, precision=hp) + bias[2 * D:]
    q = (q * scaling).reshape(T, B * num_heads, hd).transpose(1, 0, 2)
    k = k.reshape(S, B * num_heads, hd).transpose(1, 0, 2)
    v = v.reshape(S, B * num_heads, hd).transpose(1, 0, 2)
    s = jnp.einsum("btd,bsd->bts", q, k, precision=hp)
    p = jax.nn.softmax(s, axis=-1)
    a = jnp.einsum("bts,bsd->btd", p, v, precision=hp)
    a = a.transpose(1, 0, 2).reshape(T * B, D)
    out = jnp.dot(a, params["out_proj_weight"].T, precision=hp) + params["out_proj_bias"]
    wavg = p.reshape(B, num_heads, T, S).sum(axis=1) / num_heads
    return out.reshape(T, B, D), wavg


if __name__ == "__main__":
    T, B, D, H = 8, 2, 128, 4       # head_dim=32 -> G=4, 128-lane packed blocks
    key = jax.random.PRNGKey(0)
    k_param, k_x, k_k, k_v = jax.random.split(key, 4)
    params = init_params(k_param, D)
    x = jax.random.normal(k_x, (T, B, D), jnp.float32)

    # 1) Self-attention, exact (f32 MXU operands) path.
    out, attn_w = multihead_attention_forward(x, x, x, params, H)
    out, attn_w = jax.block_until_ready((out, attn_w))
    ref_out, ref_w = reference_forward(x, x, x, params, H)
    assert out.shape == (T, B, D) and attn_w.shape == (B, T, T)
    assert jnp.allclose(out, ref_out, atol=1e-4, rtol=1e-4)
    assert jnp.allclose(attn_w, ref_w, atol=1e-4, rtol=1e-4)

    # 2) Cross-attention (generic projection path), exact.
    S = 16
    kx = jax.random.normal(k_k, (S, B, D), jnp.float32)
    vx = jax.random.normal(k_v, (S, B, D), jnp.float32)
    out2, w2 = multihead_attention_forward(x, kx, vx, params, H)
    out2, w2 = jax.block_until_ready((out2, w2))
    ref_out2, ref_w2 = reference_forward(x, kx, vx, params, H)
    assert out2.shape == (T, B, D) and w2.shape == (B, T, S)
    assert jnp.allclose(out2, ref_out2, atol=1e-4, rtol=1e-4)
    assert jnp.allclose(w2, ref_w2, atol=1e-4, rtol=1e-4)

    # 3) Self-attention, bf16-MXU fast path (looser tolerance).
    out3, w3 = multihead_attention_forward(x, x, x, params, H, mxu_dtype=jnp.bfloat16)
    out3, w3 = jax.block_until_ready((out3, w3))
    assert jnp.allclose(out3, ref_out, atol=5e-2, rtol=5e-2)
    assert jnp.allclose(w3, ref_w, atol=5e-2, rtol=5e-2)

    print("KERNEL_OK")
</pallas_src>

<mosaic_0001>
module attributes {stable_mosaic.version = 11 : i64} {
  func.func @_linear_kernel(%arg0: i32, %arg1: i32, %arg2: i32, %arg3: memref<16x128xf32, #tpu.memory_space<vmem>>, %arg4: memref<128x128xf32, #tpu.memory_space<vmem>>, %arg5: memref<1x128xf32, #tpu.memory_space<vmem>>, %arg6: memref<16x128xf32, #tpu.memory_space<vmem>>, %arg7: memref<16x128xf32, #tpu.memory_space<vmem>>) attributes {dimension_semantics = [#tpu.dimension_semantics<parallel>, #tpu.dimension_semantics<parallel>, #tpu.dimension_semantics<arbitrary>], iteration_bounds = array<i64: 1, 3, 1>, scalar_prefetch = 0 : i64, scratch_operands = 1 : i64, tpu.core_type = #tpu.core_type<tc>, window_params = [{transform_indices = @transform_0, window_bounds = array<i64: 16, 128>}, {transform_indices = @transform_1, window_bounds = array<i64: 128, 128>}, {transform_indices = @transform_2, window_bounds = array<i64: 1, 128>}, {transform_indices = @transform_3, window_bounds = array<i64: 16, 128>}]} {
    %c0_i32 = arith.constant 0 : i32
    %0 = arith.cmpi eq, %arg2, %c0_i32 : i32
    %1 = arith.extui %0 : i1 to i32
    %c0_i32_0 = arith.constant 0 : i32
    %2 = arith.cmpi ne, %1, %c0_i32_0 : i32
    scf.if %2 {
      %cst_10 = arith.constant 0.000000e+00 : f32
      %12 = vector.broadcast %cst_10 : f32 to vector<16x128xf32>
      %c0_11 = arith.constant 0 : index
      %c0_12 = arith.constant 0 : index
      %13 = vector.load %arg7[%c0_11, %c0_12] : memref<16x128xf32, #tpu.memory_space<vmem>>, vector<16x128xf32>
      tpu.vector_store %arg7[%c0_11, %c0_12], %12 {strides = array<i32>} : memref<16x128xf32, #tpu.memory_space<vmem>>, vector<16x128xf32>,
    } else {
    }
    %c0 = arith.constant 0 : index
    %c0_1 = arith.constant 0 : index
    %3 = vector.load %arg3[%c0, %c0_1] : memref<16x128xf32, #tpu.memory_space<vmem>>, vector<16x128xf32>
    %c0_2 = arith.constant 0 : index
    %c0_3 = arith.constant 0 : index
    %4 = vector.load %arg4[%c0_2, %c0_3] : memref<128x128xf32, #tpu.memory_space<vmem>>, vector<128x128xf32>
    %c0_4 = arith.constant 0 : index
    %c0_5 = arith.constant 0 : index
    %5 = vector.load %arg7[%c0_4, %c0_5] : memref<16x128xf32, #tpu.memory_space<vmem>>, vector<16x128xf32>
    %cst = arith.constant dense<0.000000e+00> : vector<16x128xf32>
    %6 = tpu.matmul %3, %4, %cst {dimension_numbers = #tpu.dot_dimension_numbers<[1], [0], [0], [1], [0, 0, 1, 1], [], []>} : vector<16x128xf32>, vector<128x128xf32>, vector<16x128xf32> -> vector<16x128xf32>
    %7 = arith.addf %5, %6 : vector<16x128xf32>
    %c0_6 = arith.constant 0 : index
    %c0_7 = arith.constant 0 : index
    %8 = vector.load %arg7[%c0_6, %c0_7] : memref<16x128xf32, #tpu.memory_space<vmem>>, vector<16x128xf32>
    tpu.vector_store %arg7[%c0_6, %c0_7], %7 {strides = array<i32>} : memref<16x128xf32, #tpu.memory_space<vmem>>, vector<16x128xf32>,
    %c0_i32_8 = arith.constant 0 : i32
    %9 = arith.cmpi eq, %arg2, %c0_i32_8 : i32
    %10 = arith.extui %9 : i1 to i32
    %c0_i32_9 = arith.constant 0 : i32
    %11 = arith.cmpi ne, %10, %c0_i32_9 : i32
    scf.if %11 {
      %c0_10 = arith.constant 0 : index
      %c0_11 = arith.constant 0 : index
      %12 = vector.load %arg7[%c0_10, %c0_11] : memref<16x128xf32, #tpu.memory_space<vmem>>, vector<16x128xf32>
      %c0_12 = arith.constant 0 : index
      %c0_13 = arith.constant 0 : index
      %13 = vector.load %arg5[%c0_12, %c0_13] : memref<1x128xf32, #tpu.memory_space<vmem>>, vector<1x128xf32>
      %14 = vector.broadcast %13 : vector<1x128xf32> to vector<16x128xf32>
      %15 = arith.addf %12, %14 : vector<16x128xf32>
      %c0_14 = arith.constant 0 : index
      %c0_15 = arith.constant 0 : index
      %16 = vector.load %arg6[%c0_14, %c0_15] : memref<16x128xf32, #tpu.memory_space<vmem>>, vector<16x128xf32>
      tpu.vector_store %arg6[%c0_14, %c0_15], %15 {strides = array<i32>} : memref<16x128xf32, #tpu.memory_space<vmem>>, vector<16x128xf32>,
    } else {
    }
    return
  }
  func.func @transform_0(%arg0: i32, %arg1: i32, %arg2: i32) -> (i32, i32) {
    %c0_i32 = arith.constant 0 : i32
    return %arg0, %arg2 : i32, i32
  }
  func.func @transform_1(%arg0: i32, %arg1: i32, %arg2: i32) -> (i32, i32) {
    %c0_i32 = arith.constant 0 : i32
    return %arg2, %arg1 : i32, i32
  }
  func.func @transform_2(%arg0: i32, %arg1: i32, %arg2: i32) -> (i32, i32) {
    %c0_i32 = arith.constant 0 : i32
    %c0_i32_0 = arith.constant 0 : i32
    return %c0_i32, %arg1 : i32, i32
  }
  func.func @transform_3(%arg0: i32, %arg1: i32, %arg2: i32) -> (i32, i32) {
    %c0_i32 = arith.constant 0 : i32
    return %arg0, %arg1 : i32, i32
  }
}

</mosaic_0001>

<llo_original>
// kernel: tpu_custom_call.1
$region0: #{tpu_custom_call.1}
  #allocation0 [shape = 'u32[]', space=smem, size = 0x4, offset = 0x4, fixed_abs, tag = 'smem constant byte address 0x4 - core index']
  #allocation1 [shape = 'u32[144,128]{1,0:T(1,128)}', space=vmem, size = 0x12000, scoped, tag = 'internal scratch']
  #allocation2 [shape = 'f32[16,128]{1,0:T(8,128)}', space=vmem, size = 0x2000, scoped, tag = 'scratch operand']
  %s0 = inlined_call_operand.hbm [shape: f32[16,128], index: 0, kind: input, shape index: {}]
  %s1 = inlined_call_operand.hbm [shape: f32[128,384], index: 1, kind: input, shape index: {}]
  %s2 = inlined_call_operand.vmem [shape: f32[1,384], index: 2, kind: input, shape index: {}]
  %s3 = inlined_call_operand.hbm [shape: f32[16,384], index: 3, kind: output, shape index: {}]
  %s4 = sld [smem:[#allocation0]]
  $region61: #{tpu_custom_call.1} parent=0
    _
  %s6 = ssub.s32 1, %s4
  %s7 = scalar_select 0, %s6, %s4
  $region1: #{tpu_custom_call.1} parent=0
    #allocation3 [shape = 'u8[8192]{0}', space=vmem, size = 0x2000, scoped, tag = 'input window, operand 0, single buffered']
    #allocation4 [shape = 's32[2]{0}', space=sflag, size = 0x8, scoped, tag = 'scoped memory for tpu_custom_call.1']
    #allocation5 [shape = 's32[2]{0}', space=sflag, size = 0x8, scoped, tag = 'scoped memory for tpu_custom_call.1']
    #allocation6 [shape = 'u8[131072]{0}', space=vmem, size = 0x20000, scoped, tag = 'input window, operand 1']
    #allocation7 [shape = 's32[2]{0}', space=sflag, size = 0x8, scoped, tag = 'scoped memory for tpu_custom_call.1']
    #allocation8 [shape = 'u8[16384]{0}', space=vmem, size = 0x4000, scoped, tag = 'output window, operand 0']
    %8 = vsyncpa [#allocation4], 0
    %9 = vsyncpa [#allocation7], 0
    %s10 = scalar_lea.sflag [#allocation7], 1
    %11 = vsyncpa %s10, 0
    %12 = vsyncpa [#allocation5], 0
    %s13 = scalar_lea.sflag [#allocation5], 1
    %14 = vsyncpa %s13, 0
    loop: start=0, step=1, limit=5
    $region2: #{tpu_custom_call.1} parent=1 // loop_pre_header
      _
    $region3: #{tpu_custom_call.1} parent=1 // loop_header
      %s16 = sphi 0, %s20
      %p17 = scmp.ge.s32.totalorder %s16, 5
      %s23 = sphi 0, %s42
      %s24 = sphi 0, %s38
      %s25 = sphi 0, %s34
      %s26 = sphi 0, %s23
      %s27 = sphi 0, %s24
      %s28 = sphi 0, %s25
      %s29 = sphi 0, %s26
      %s30 = sphi 0, %s27
      %s31 = sphi 0, %s28
      %s47 = sphi 0, %s49
      %s50 = sphi 0, %s47
      %s51 = sphi 0, %s50
      %s67 = sphi 0, %s51
      %s75 = sphi 0, %s77
      %s78 = sphi 0, %s75
      %s79 = sphi 0, %s78
      %s95 = sphi 0, %s79
      %s101 = sphi 0, %s103
      %s104 = sphi 0, %s101
      %s105 = sphi 0, %s104
      %s121 = sphi 0, %s105
      %s129 = sphi 0, %s131
      %s132 = sphi 0, %s129
      %s133 = sphi 0, %s132
      %s149 = sphi 0, %s133
    $region4: #{tpu_custom_call.1} parent=1 // loop_header_branch
      %19 = sbr.rel (%p17) target = $region8
    $region5: #{tpu_custom_call.1} parent=1 // loop_body
      %s21 = ssub.s32 %s16, 1
      %s22 = ssub.s32 %s16, 2
      %s32 = sadd.s32 1, %s25
      %p33 = scmp.ge.s32.totalorder %s32, 1
      %s34 = scalar_select %p33, 0, %s32
      %s35 = sadd.s32 1, %s24
      %s36 = scalar_select %p33, %s35, %s24
      %p37 = scmp.ge.s32.totalorder %s36, 3
      %s38 = scalar_select %p37, 0, %s36
      %s39 = sadd.s32 1, %s23
      %s40 = scalar_select %p37, %s39, %s23
      %p41 = scmp.ge.s32.totalorder %s40, 1
      %s42 = scalar_select %p41, 0, %s40
      %s43 = ssub.s32 %s23, %s42
      %s44 = ssub.s32 %s25, %s34
      %s45 = sor.u32 %s43, %s44
      %p46 = scmp.eq.s32.totalorder %s45, 0
      %s48 = sadd.s32 %s47, 1
      %s49 = scalar_select %p46, %s47, %s48
      %p52 = pneg %p46
      %p53 = scmp.eq.s32.totalorder %s16, 2
      %p54 = por %p52, %p53
      %p55 = scmp.ne.s32.totalorder %s47, %s50
      %p56 = scmp.eq.s32.totalorder %s16, 0
      %p57 = por %p55, %p56
      %p58 = scmp.ne.s32.totalorder %s47, %s50
      %p59 = scmp.eq.s32.totalorder %s21, 2
      %p60 = por %p58, %p59
      %p61 = scmp.ne.s32.totalorder %s50, %s51
      %p62 = scmp.eq.s32.totalorder %s21, 0
      %p63 = por %p61, %p62
      %p64 = scmp.ne.s32.totalorder %s50, %s51
      %p65 = scmp.eq.s32.totalorder %s22, 2
      %p66 = por %p64, %p65
      %p68 = scmp.ne.s32.totalorder %s51, %s67
      %p69 = scmp.eq.s32.totalorder %s22, 0
      %p70 = por %p68, %p69
      %s71 = ssub.s32 %s25, %s34
      %s72 = ssub.s32 %s24, %s38
      %s73 = sor.u32 %s71, %s72
      %p74 = scmp.eq.s32.totalorder %s73, 0
      %s76 = sadd.s32 %s75, 1
      %s77 = scalar_select %p74, %s75, %s76
      %p80 = pneg %p74
      %p81 = scmp.eq.s32.totalorder %s16, 2
      %p82 = por %p80, %p81
      %p83 = scmp.ne.s32.totalorder %s75, %s78
      %p84 = scmp.eq.s32.totalorder %s16, 0
      %p85 = por %p83, %p84
      %p86 = scmp.ne.s32.totalorder %s75, %s78
      %p87 = scmp.eq.s32.totalorder %s21, 2
      %p88 = por %p86, %p87
      %p89 = scmp.ne.s32.totalorder %s78, %s79
      %p90 = scmp.eq.s32.totalorder %s21, 0
      %p91 = por %p89, %p90
      %p92 = scmp.ne.s32.totalorder %s78, %s79
      %p93 = scmp.eq.s32.totalorder %s22, 2
      %p94 = por %p92, %p93
      %p96 = scmp.ne.s32.totalorder %s79, %s95
      %p97 = scmp.eq.s32.totalorder %s22, 0
      %p98 = por %p96, %p97
      %s99 = ssub.s32 %s24, %s38
      %p100 = scmp.eq.s32.totalorder %s99, 0
      %s102 = sadd.s32 %s101, 1
      %s103 = scalar_select %p100, %s101, %s102
      %p106 = pneg %p100
      %p107 = scmp.eq.s32.totalorder %s16, 2
      %p108 = por %p106, %p107
      %p109 = scmp.ne.s32.totalorder %s101, %s104
      %p110 = scmp.eq.s32.totalorder %s16, 0
      %p111 = por %p109, %p110
      %p112 = scmp.ne.s32.totalorder %s101, %s104
      %p113 = scmp.eq.s32.totalorder %s21, 2
      %p114 = por %p112, %p113
      %p115 = scmp.ne.s32.totalorder %s104, %s105
      %p116 = scmp.eq.s32.totalorder %s21, 0
      %p117 = por %p115, %p116
      %p118 = scmp.ne.s32.totalorder %s104, %s105
      %p119 = scmp.eq.s32.totalorder %s22, 2
      %p120 = por %p118, %p119
      %p122 = scmp.ne.s32.totalorder %s105, %s121
      %p123 = scmp.eq.s32.totalorder %s22, 0
      %p124 = por %p122, %p123
      %s125 = ssub.s32 %s23, %s42
      %s126 = ssub.s32 %s24, %s38
      %s127 = sor.u32 %s125, %s126
      %p128 = scmp.eq.s32.totalorder %s127, 0
      %s130 = sadd.s32 %s129, 1
      %s131 = scalar_select %p128, %s129, %s130
      %p134 = pneg %p128
      %p135 = scmp.eq.s32.totalorder %s16, 2
      %p136 = por %p134, %p135
      %p137 = scmp.ne.s32.totalorder %s129, %s132
      %p138 = scmp.eq.s32.totalorder %s16, 0
      %p139 = por %p137, %p138
      %p140 = scmp.ne.s32.totalorder %s129, %s132
      %p141 = scmp.eq.s32.totalorder %s21, 2
      %p142 = por %p140, %p141
      %p143 = scmp.ne.s32.totalorder %s132, %s133
      %p144 = scmp.eq.s32.totalorder %s21, 0
      %p145 = por %p143, %p144
      %p146 = scmp.ne.s32.totalorder %s132, %s133
      %p147 = scmp.eq.s32.totalorder %s22, 2
      %p148 = por %p146, %p147
      %p150 = scmp.ne.s32.totalorder %s133, %s149
      %p151 = scmp.eq.s32.totalorder %s22, 0
      %p152 = por %p150, %p151
      %p153 = scmp.le.s32.totalorder 1, %s16
      %p154 = scmp.lt.s32.totalorder %s16, 4
      %p155 = pnand %p153, %p154
      %p156 = pneg %p155
      // Predicated region
      $region9: #{tpu_custom_call.1} parent=5 // pred_check
        _
      $region10: #{tpu_custom_call.1} parent=5 // pred_check_branch
        %158 = sbr.rel (%p155) target = $region12
      $region11: #{tpu_custom_call.1} parent=5 // pred_region
        %s159 = ssub.s32 %s16, 1
        // Predicated region
        $region13: #{tpu_custom_call.1} parent=11 // pred_check
          %p160 = pneg %p63
        $region14: #{tpu_custom_call.1} parent=11 // pred_check_branch
          %162 = sbr.rel (%p160) target = $region16
        $region15: #{tpu_custom_call.1} parent=11 // pred_region
          %s163 = smul.u32 2, %s26
          %s165 = ssub.s32 256, 256
          %166 = vsyncadd [#allocation4], %s165
          %s167 = sadd.s32 %s28, %s163
          %s168 = smul.addr %s167, 128
          %s169 = scalar_lea.hbm %s0, %s168
          %s170 = sshll.u32 [#allocation3], 4
          %s171 = int_to_ptr.vmem [resolvable:$true] %s170
          %176 = dma.hbm_to_vmem [thread:$0]  %s169, 256, %s171, [#allocation4], 128, 128, 8
        $region16: #{tpu_custom_call.1} parent=11 // pred_fallthru
          _
      $region12: #{tpu_custom_call.1} parent=5 // pred_fallthru
        _
      %p177 = scmp.lt.s32.totalorder %s16, 3
      // Predicated region
      $region17: #{tpu_custom_call.1} parent=5 // pred_check
        %p178 = pneg %p177
      $region18: #{tpu_custom_call.1} parent=5 // pred_check_branch
        %180 = sbr.rel (%p178) target = $region20
      $region19: #{tpu_custom_call.1} parent=5 // pred_region
        // Predicated region
        $region21: #{tpu_custom_call.1} parent=19 // pred_check
          %p181 = pneg %p85
        $region22: #{tpu_custom_call.1} parent=19 // pred_check_branch
          %183 = sbr.rel (%p181) target = $region24
        $region23: #{tpu_custom_call.1} parent=19 // pred_region
          %s184 = sand.u32 %s75, 1
          %s185 = scalar_lea.sflag [#allocation7], %s184
          %s186 = sand.u32 %s75, 1
          %s187 = smul.addr %s186, 128
          %s188 = scalar_lea.vmem [#allocation6], %s187
          %s189 = smul.u32 16, %s25
          %s191 = ssub.s32 2048, 2048
          %192 = vsyncadd %s185, %s191
          %s193 = smul.addr %s189, 3
          %s194 = sadd.s32 %s24, %s193
          %s195 = smul.addr %s194, 128
          %s196 = scalar_lea.hbm %s1, %s195
          %s197 = sshll.u32 %s188, 4
          %s198 = int_to_ptr.vmem [resolvable:$true] %s197
          %203 = dma.hbm_to_vmem [thread:$0]  %s196, 2048, %s198, %s185, 384, 128, 8
        $region24: #{tpu_custom_call.1} parent=19 // pred_fallthru
          _
        // Predicated region
        $region25: #{tpu_custom_call.1} parent=19 // pred_check
          %p204 = pneg %p111
        $region26: #{tpu_custom_call.1} parent=19 // pred_check_branch
          %206 = sbr.rel (%p204) target = $region28
        $region27: #{tpu_custom_call.1} parent=19 // pred_region
          %p207 = scmp.lt.s32.totalorder %s24, 2
          %s208 = scalar_select %p207, %s24, 2
          %s209 = scalar_lea.vmem %s2, %s208
        $region28: #{tpu_custom_call.1} parent=19 // pred_fallthru
          _
      $region20: #{tpu_custom_call.1} parent=5 // pred_fallthru
        _
      %p210 = scmp.le.s32.totalorder 1, %s16
      %p211 = scmp.lt.s32.totalorder %s16, 4
      %p212 = pnand %p210, %p211
      %p213 = pneg %p212
      // Predicated region
      $region29: #{tpu_custom_call.1} parent=5 // pred_check
        _
      $region30: #{tpu_custom_call.1} parent=5 // pred_check_branch
        %215 = sbr.rel (%p212) target = $region32
      $region31: #{tpu_custom_call.1} parent=5 // pred_region
        %s216 = ssub.s32 %s16, 1
        // Predicated region
        $region33: #{tpu_custom_call.1} parent=31 // pred_check
          %p217 = pneg %p63
        $region34: #{tpu_custom_call.1} parent=31 // pred_check_branch
          %219 = sbr.rel (%p217) target = $region36
        $region35: #{tpu_custom_call.1} parent=31 // pred_region
          %220 = dma.done [#allocation4], 256
        $region36: #{tpu_custom_call.1} parent=31 // pred_fallthru
          _
        %s221 = sand.u32 %s78, 1
        %s222 = scalar_lea.sflag [#allocation7], %s221
        %s223 = sand.u32 %s78, 1
        %s224 = smul.addr %s223, 128
        %s225 = scalar_lea.vmem [#allocation6], %s224
        // Predicated region
        $region37: #{tpu_custom_call.1} parent=31 // pred_check
          %p226 = pneg %p91
        $region38: #{tpu_custom_call.1} parent=31 // pred_check_branch
          %228 = sbr.rel (%p226) target = $region40
        $region39: #{tpu_custom_call.1} parent=31 // pred_region
          %229 = dma.done %s222, 2048
        $region40: #{tpu_custom_call.1} parent=31 // pred_fallthru
          _
        %p230 = pneg %p63
        %p231 = pneg %p60
        %s232 = sand.u32 %s78, 1
        %s233 = scalar_lea.sflag [#allocation7], %s232
        %s234 = sand.u32 %s78, 1
        %s235 = smul.addr %s234, 128
        %s236 = scalar_lea.vmem [#allocation6], %s235
        %p237 = pneg %p91
        %p238 = pneg %p88
        %p239 = scmp.lt.s32.totalorder %s27, 2
        %s240 = scalar_select %p239, %s27, 2
        %s241 = scalar_lea.vmem %s2, %s240
        %p242 = pneg %p117
        %p243 = pneg %p114
        %p244 = pneg %p145
        %p245 = pneg %p142
        %s246 = sand.u32 %s132, 1
        %s247 = scalar_lea.sflag [#allocation5], %s246
        %s248 = sand.u32 %s132, 1
        %s249 = smul.addr %s248, 16
        %s250 = scalar_lea.vmem [#allocation8], %s249
        %s251 = smul.u32 2, %s26
        %s252 = smul.u32 16, %s28
        %p253 = scmp.lt.s32.totalorder %s27, 2
        %s254 = scalar_select %p253, %s27, 2
        %s255 = scalar_lea.vmem %s2, %s254
        %s256 = smul.u32 2, %s26
        %p257 = scmp.eq.s32.totalorder %s28, 0
        // Predicated region
        $region41: #{tpu_custom_call.1} parent=31 // pred_check
          %p258 = pneg %p257
        $region42: #{tpu_custom_call.1} parent=31 // pred_check_branch
          %260 = sbr.rel (%p258) target = $region44
        $region43: #{tpu_custom_call.1} parent=31 // pred_region
          %261 = vst [vmem:[#allocation2] sm:$0xff] 0.0
          %262 = vst [vmem:[#allocation2 + $0x8] sm:$0xff] 0.0
        $region44: #{tpu_custom_call.1} parent=31 // pred_fallthru
          _
        %v263 = vld [vmem:[#allocation3] sm:$0xff]
        %v264 = vld [vmem:[#allocation3 + $0x8] sm:$0xff]
        %v265 = vld [vmem:[%s225] sm:$0xff]
        %v266 = vld [vmem:[%s225 + $0x8] sm:$0xff]
        %v267 = vld [vmem:[%s225 + $0x10] sm:$0xff]
        %v268 = vld [vmem:[%s225 + $0x18] sm:$0xff]
        %v269 = vld [vmem:[%s225 + $0x20] sm:$0xff]
        %v270 = vld [vmem:[%s225 + $0x28] sm:$0xff]
        %v271 = vld [vmem:[%s225 + $0x30] sm:$0xff]
        %v272 = vld [vmem:[%s225 + $0x38] sm:$0xff]
        %v273 = vld [vmem:[%s225 + $0x40] sm:$0xff]
        %v274 = vld [vmem:[%s225 + $0x48] sm:$0xff]
        %v275 = vld [vmem:[%s225 + $0x50] sm:$0xff]
        %v276 = vld [vmem:[%s225 + $0x58] sm:$0xff]
        %v277 = vld [vmem:[%s225 + $0x60] sm:$0xff]
        %v278 = vld [vmem:[%s225 + $0x68] sm:$0xff]
        %v279 = vld [vmem:[%s225 + $0x70] sm:$0xff]
        %v280 = vld [vmem:[%s225 + $0x78] sm:$0xff]
        %v281 = vld [vmem:[#allocation2] sm:$0xff]
        %v282 = vld [vmem:[#allocation2 + $0x8] sm:$0xff]
        %283 = vmatprep.subr.mxu0 0.0
        %284 = vmatpush1.msra.mxu0 %v265
        %285 = vmatprep.subr.mxu0 0.0
        %286 = vmatpush1.msra.mxu0 %v266
        %287 = vmatprep.subr.mxu0 0.0
        %288 = vmatpush1.msra.mxu0 %v267
        %289 = vmatprep.subr.mxu0 0.0
        %290 = vmatpush1.msra.mxu0 %v268
        %291 = vmatprep.subr.mxu0 0.0
        %292 = vmatpush1.msra.mxu0 %v269
        %293 = vmatprep.subr.mxu0 0.0
        %294 = vmatpush1.msra.mxu0 %v270
        %295 = vmatprep.subr.mxu0 0.0
        %296 = vmatpush1.msra.mxu0 %v271
        %297 = vmatprep.subr.mxu0 0.0
        %298 = vmatpush1.msra.mxu0 %v272
        %299 = vmatprep.subr.mxu0 0.0
        %300 = vmatpush1.msra.mxu0 %v273
        %301 = vmatprep.subr.mxu0 0.0
        %302 = vmatpush1.msra.mxu0 %v274
        %303 = vmatprep.subr.mxu0 0.0
        %304 = vmatpush1.msra.mxu0 %v275
        %305 = vmatprep.subr.mxu0 0.0
        %306 = vmatpush1.msra.mxu0 %v276
        %307 = vmatprep.subr.mxu0 0.0
        %308 = vmatpush1.msra.mxu0 %v277
        %309 = vmatprep.subr.mxu0 0.0
        %310 = vmatpush1.msra.mxu0 %v278
        %311 = vmatprep.subr.mxu0 0.0
        %312 = vmatpush1.msra.mxu0 %v279
        %313 = vmatprep.subr.mxu0 0.0
        %314 = vmatpush1.msra.mxu0 %v280
        %315 = vmatprep.subr.mxu0 0.0
        %316 = vmatpush1.msra.mxu0 0.0
        %317 = vmatprep.subr.mxu0 0.0
        %318 = vmatpush1.msra.mxu0 0.0
        %319 = vmatprep.subr.mxu0 0.0
        %320 = vmatpush1.msra.mxu0 0.0
        %321 = vmatprep.subr.mxu0 0.0
        %322 = vmatpush1.msra.mxu0 0.0
        %323 = vmatprep.subr.mxu0 0.0
        %324 = vmatpush1.msra.mxu0 0.0
        %325 = vmatprep.subr.mxu0 0.0
        %326 = vmatpush1.msra.mxu0 0.0
        %327 = vmatprep.subr.mxu0 0.0
        %328 = vmatpush1.msra.mxu0 0.0
        %329 = vmatprep.subr.mxu0 0.0
        %330 = vmatpush1.msra.mxu0 0.0
        %331 = vmatprep.subr.mxu0 0.0
        %332 = vmatpush1.msra.mxu0 0.0
        %333 = vmatprep.subr.mxu0 0.0
        %334 = vmatpush1.msra.mxu0 0.0
        %335 = vmatprep.subr.mxu0 0.0
        %336 = vmatpush1.msra.mxu0 0.0
        %337 = vmatprep.subr.mxu0 0.0
        %338 = vmatpush1.msra.mxu0 0.0
        %339 = vmatprep.subr.mxu0 0.0
        %340 = vmatpush1.msra.mxu0 0.0
        %341 = vmatprep.subr.mxu0 0.0
        %342 = vmatpush1.msra.mxu0 0.0
        %343 = vmatprep.subr.mxu0 0.0
        %344 = vmatpush1.msra.mxu0 0.0
        %345 = vmatprep.subr.mxu0 0.0
        %346 = vmatpush1.msra.mxu0 0.0
        %347 = vmatprep.mubr.f32.mxu0 0.0
        %348 = vmatmul.mubr.f32.gmra.mrb[0].mxu0 %v263
        %v349 = vpop.f32.mrb[0].mxu0
        %v350 = vadd.f32 0.0, %v349
        %v351 = vpop.f32.mrb[0].mxu0
        %352 = vmatprep.mubr.f32.mxu0 0.0
        %353 = vmatmul.mubr.f32.gmra.mrb[0].mxu0 %v264
        %v354 = vpop.f32.mrb[0].mxu0
        %v355 = vadd.f32 0.0, %v354
        %v356 = vpop.f32.mrb[0].mxu0
        %357 = vdwg.mxu0
        %v358 = vadd.f32 %v281, %v350
        %v359 = vadd.f32 %v282, %v355
        %360 = vst [vmem:[#allocation2] sm:$0xff] %v358
        %361 = vst [vmem:[#allocation2 + $0x8] sm:$0xff] %v359
        // Predicated region
        $region45: #{tpu_custom_call.1} parent=31 // pred_check
          %p362 = pneg %p257
        $region46: #{tpu_custom_call.1} parent=31 // pred_check_branch
          %364 = sbr.rel (%p362) target = $region48
        $region47: #{tpu_custom_call.1} parent=31 // pred_region
          %v365 = vld [vmem:[#allocation2] sm:$0xff]
          %v366 = vld [vmem:[#allocation2 + $0x8] sm:$0xff]
          %v367 = vld [vmem:[%s255] sm:$0x1]
          %v369 = vlaneseq
          %v370 = vshrl.u32 %v369, 7
          %v371 = vsub.s32 0, %v370
          %v372 = vrot.slane %v367, %v371
          %v374 = vadd.f32 %v365, %v372
          %v375 = vadd.f32 %v366, %v372
          %376 = vst [vmem:[%s250] sm:$0xff] %v374
          %377 = vst [vmem:[%s250 + $0x8] sm:$0xff] %v375
        $region48: #{tpu_custom_call.1} parent=31 // pred_fallthru
          _
        %s378 = sand.u32 %s132, 1
        %s379 = scalar_lea.sflag [#allocation5], %s378
        %s380 = sand.u32 %s132, 1
        %s381 = smul.addr %s380, 16
        %s382 = scalar_lea.vmem [#allocation8], %s381
        // Predicated region
        $region49: #{tpu_custom_call.1} parent=31 // pred_check
          %p383 = pneg %p142
        $region50: #{tpu_custom_call.1} parent=31 // pred_check_branch
          %385 = sbr.rel (%p383) target = $region52
        $region51: #{tpu_custom_call.1} parent=31 // pred_region
          %s386 = smul.u32 2, %s26
          %s388 = ssub.s32 256, 256
          %389 = vsyncadd %s379, %s388
          %s390 = smul.addr %s386, 3
          %s391 = sadd.s32 %s27, %s390
          %s392 = smul.addr %s391, 128
          %s393 = scalar_lea.hbm %s3, %s392
          %s394 = sshll.u32 %s382, 4
          %s395 = int_to_ptr.vmem [resolvable:$true] %s394
          %400 = dma.vmem_to_hbm [thread:$0]  %s395, 256, %s393, %s379, 128, 384, 8
        $region52: #{tpu_custom_call.1} parent=31 // pred_fallthru
          _
      $region32: #{tpu_custom_call.1} parent=5 // pred_fallthru
        _
      %p401 = scmp.le.s32.totalorder 2, %s16
      // Predicated region
      $region53: #{tpu_custom_call.1} parent=5 // pred_check
        %p402 = pneg %p401
      $region54: #{tpu_custom_call.1} parent=5 // pred_check_branch
        %404 = sbr.rel (%p402) target = $region56
      $region55: #{tpu_custom_call.1} parent=5 // pred_region
        %s405 = ssub.s32 %s16, 2
        // Predicated region
        $region57: #{tpu_custom_call.1} parent=55 // pred_check
          %p406 = pneg %p148
        $region58: #{tpu_custom_call.1} parent=55 // pred_check_branch
          %408 = sbr.rel (%p406) target = $region60
        $region59: #{tpu_custom_call.1} parent=55 // pred_region
          %s409 = sand.u32 %s133, 1
          %s410 = scalar_lea.sflag [#allocation5], %s409
          %s411 = sand.u32 %s133, 1
          %s412 = smul.addr %s411, 16
          %s413 = scalar_lea.vmem [#allocation8], %s412
          %414 = dma.done %s410, 256
        $region60: #{tpu_custom_call.1} parent=55 // pred_fallthru
          _
      $region56: #{tpu_custom_call.1} parent=5 // pred_fallthru
        _
    $region6: #{tpu_custom_call.1} parent=1 // loop_footer
      %s20 = sadd.s32 1, %s16
    $region7: #{tpu_custom_call.1} parent=1 // loop_footer_branch
      %15 = sbr.rel target = $region3
    $region8: #{tpu_custom_call.1} parent=1 // loop_exit
      _
    %415 = vsyncpa [#allocation4], 1
    %s416 = scalar_lea.sflag [#allocation4], 1
    %417 = vsyncpa %s416, 1
    %418 = vsyncpa [#allocation7], 1
    %s419 = scalar_lea.sflag [#allocation7], 1
    %420 = vsyncpa %s419, 1
    %421 = vsyncpa [#allocation5], 1
    %s422 = scalar_lea.sflag [#allocation5], 1
    %423 = vsyncpa %s422, 1

</llo_original>
